<compile_context>
chip_gen: v7x
topology: tpu7x:2x2x1
jax: 0.10.0
libtpu: 0.0.40
codegen_flags: <defaults>
</compile_context>

<pallas_src>
import functools
import math

import jax
import jax.numpy as jnp
from jax import lax
from jax.experimental import pallas as pl
from jax.experimental.pallas import tpu as pltpu


def _cdiv(a, b):
    return -(-a // b)


def _focal_kernel(p_ref, t_ref, o_ref, *, C, tile_m, p_inner, valid_hw,
                  alpha, gamma, eps, use_labels, ignore0, need_lane_mask):
    """One (C, tile_m) pixel tile; accumulates the channel-reduced per-pixel
    loss row into the VMEM-resident (1, tile_m) output accumulator."""
    po = pl.program_id(1)   # outer pixel chunk  ("parallel")
    pi = pl.program_id(2)   # inner pixel tile   ("arbitrary" reduction axis)

    @pl.when(pi == 0)
    def _():
        o_ref[...] = jnp.zeros_like(o_ref)

    logits = p_ref[...].astype(jnp.float32)              # (C, TM)

    # --- softmax over the channel (sublane) axis; divides/logs are per-pixel --
    m = jnp.max(logits, axis=0, keepdims=True)            # (1, TM)  XLU
    z = logits - m
    e = jnp.exp(z)                                         # 1 exp / element (EUP)
    s = jnp.sum(e, axis=0, keepdims=True)                  # (1, TM)  XLU
    inv_s = 1.0 / s                                        # per-pixel divide
    log_s = jnp.log(s)                                     # per-pixel log
    p = e * inv_s + eps                                    # softmax + eps (faithful)
    one_m_p = 1.0 - p

    # log-softmax identity (no per-element log for p); clamp at log(eps) to
    # mimic the reference's log(softmax + eps) saturation.
    log_p = jnp.maximum(z - log_s, math.log(eps))
    # NOTE: faithful to the PyTorch module -- log(1-p) is NaN/-inf if a channel
    # saturates so that p >= 1 (the torch reference behaves the same).
    log_1mp = jnp.log(one_m_p)                             # 1 log / element (EUP)

    # --- (1-p)^gamma and p^gamma, loss constants folded in --------------------
    g = float(gamma)
    na = -float(alpha)
    nb = -(1.0 - float(alpha))
    if g.is_integer() and 0.0 <= g <= 8.0:
        gi = int(g)
        if gi == 0:
            term_true = na * log_p
            term_false = nb * log_1mp
        else:
            pow_1mp, pow_p = one_m_p, p
            for _ in range(gi - 1):                        # gamma=2 -> x*x (VALU)
                pow_1mp = pow_1mp * one_m_p
                pow_p = pow_p * p
            term_true = (na * pow_1mp) * log_p
            term_false = (nb * pow_p) * log_1mp
    else:
        # Non-integer gamma: reuse the logs we already have (x**g = exp(g*log x))
        term_true = na * jnp.exp(g * log_1mp) * log_p
        term_false = nb * jnp.exp(g * log_p) * log_1mp

    # --- target blend ----------------------------------------------------------
    if use_labels:
        lbl = t_ref[...]                                   # (1, TM) int32
        cid = lax.broadcasted_iota(jnp.int32, (C, tile_m), 0)
        tgt = (cid == lbl).astype(jnp.float32)
    else:
        tgt = t_ref[...].astype(jnp.float32)               # (C, TM) one-hot / soft

    # Fused blend: tgt*term_true + (1-tgt)*term_false with one fewer multiply.
    per_elem = term_false + tgt * (term_true - term_false)

    if ignore0:
        # Channel 0 dropped AFTER the softmax (matches the reference slicing);
        # `where` keeps a NaN in channel 0 from leaking into the sum.
        keep = lax.broadcasted_iota(jnp.int32, (C, tile_m), 0) >= 1
        per_elem = jnp.where(keep, per_elem, 0.0)

    # In-kernel channel reduction (sublane-axis sum -> XLU slot, free under the
    # EUP/HBM bottleneck); accumulator is a single (1, TM) f32 row.
    row = jnp.sum(per_elem, axis=0, keepdims=True)          # (1, TM)

    if need_lane_mask:
        col = (po * p_inner + pi) * tile_m + lax.broadcasted_iota(
            jnp.int32, (1, tile_m), 1)
        row = jnp.where(col < valid_hw, row, 0.0)

    o_ref[...] += row


def focal_loss(predict, target=None, *, labels=None, alpha=0.25, gamma=2.0,
               eps=1e-8, ignore_index=None, reduction="mean", max_tile_m=8192):
    """Focal loss forward (PyTorch FocalLoss semantics).

    predict: (N, C, *) logits (f32 or bf16; compute is f32 in-kernel).
    target : one-hot (or soft) targets, same shape as predict  -- OR --
    labels : integer class labels of shape (N, *) (fast path: removes the
             one-hot HBM stream; ~2x on HBM-bound parts).
    """
    N, C = int(predict.shape[0]), int(predict.shape[1])
    HW = 1
    for d in predict.shape[2:]:
        HW *= int(d)

    use_labels = labels is not None
    if not use_labels:
        assert target is not None, "provide either `target` (one-hot) or `labels`"
        assert predict.shape == target.shape, "predict & target shape do not match"
    else:
        lbl_sz = 1
        for d in labels.shape[1:]:
            lbl_sz *= int(d)
        assert int(labels.shape[0]) == N and lbl_sz == HW, "labels shape mismatch"

    if reduction not in ("mean", "sum"):
        # TODO(synk): reduction='none' (per-pixel (N, *) output) not implemented in-kernel
        raise NotImplementedError("only 'mean' and 'sum' reductions supported")

    # --- tile sizing (generation-aware VMEM budget) ----------------------------
    in_itemsize = jnp.dtype(predict.dtype).itemsize
    sub = 8                                   # f32 sublane padding granularity
    Cp = max(C, sub)
    per_col = Cp * in_itemsize * 2            # predict, double-buffered
    if use_labels:
        per_col += sub * 4 * 2                # (1, TM) int32 labels
        tgt_itemsize = 4
    else:
        tgt_itemsize = jnp.dtype(target.dtype).itemsize
        per_col += Cp * tgt_itemsize * 2      # one-hot target, double-buffered
    per_col += sub * 4 * 2                    # (1, TM) f32 output accumulator

    try:
        vmem_cap = int(pltpu.get_tpu_info().vmem_capacity_bytes)
    except Exception:
        vmem_cap = 64 << 20                   # assume the smallest (v7x per-TC)
    budget = max(2 << 20, min(vmem_cap // 8, 12 << 20))

    cap = max(128, min(int(max_tile_m), budget // per_col) // 128 * 128)
    hw128 = _cdiv(HW, 128) * 128
    if hw128 <= cap:
        tile_m, n_tiles = hw128, 1
    else:
        n_tiles = _cdiv(HW, cap)
        tile_m = _cdiv(_cdiv(HW, n_tiles), 128) * 128   # <= cap by construction
    HW_pad = tile_m * n_tiles
    pad = HW_pad - HW

    # Split the pixel tiles into (outer parallel, inner arbitrary) so both v7x
    # TensorCores get work even for tiny batch sizes.
    p_outer = 1
    if N < 4:
        for cand in (4, 2):
            if n_tiles % cand == 0 and n_tiles >= cand:
                p_outer = cand
                break
    p_inner = n_tiles // p_outer

    # --- input prep: free reshape + (rare) lane padding -------------------------
    p3 = predict.reshape(N, C, HW)
    if pad:
        p3 = jnp.pad(p3, ((0, 0), (0, 0), (0, pad)))

    if use_labels:
        t3 = labels.reshape(N, 1, HW).astype(jnp.int32)
        if pad:
            t3 = jnp.pad(t3, ((0, 0), (0, 0), (0, pad)), constant_values=C)
        t_spec = pl.BlockSpec((None, 1, tile_m),
                              lambda n, po, pi: (n, 0, po * p_inner + pi))
    else:
        t3 = target.reshape(N, C, HW)
        if pad:
            t3 = jnp.pad(t3, ((0, 0), (0, 0), (0, pad)))
        t_spec = pl.BlockSpec((None, C, tile_m),
                              lambda n, po, pi: (n, 0, po * p_inner + pi))

    compiler_kwargs = dict(
        dimension_semantics=("parallel", "parallel", "arbitrary"))
    est_vmem = per_col * tile_m + (2 << 20)
    if est_vmem > (10 << 20):
        compiler_kwargs["vmem_limit_bytes"] = int(min(vmem_cap // 2, 2 * est_vmem))

    kernel = functools.partial(
        _focal_kernel, C=C, tile_m=tile_m, p_inner=p_inner, valid_hw=HW,
        alpha=float(alpha), gamma=float(gamma), eps=float(eps),
        use_labels=use_labels, ignore0=(ignore_index == 0),
        need_lane_mask=(pad != 0))

    out = pl.pallas_call(
        kernel,
        out_shape=jax.ShapeDtypeStruct((N, p_outer, 1, tile_m), jnp.float32),
        grid=(N, p_outer, p_inner),
        in_specs=[
            pl.BlockSpec((None, C, tile_m),
                         lambda n, po, pi: (n, 0, po * p_inner + pi)),
            t_spec,
        ],
        out_specs=pl.BlockSpec((None, None, 1, tile_m),
                               lambda n, po, pi: (n, po, 0, 0)),
        compiler_params=pltpu.CompilerParams(**compiler_kwargs),
    )(p3, t3)

    # Tiny epilogue: final scalar reduction + mean scaling (ignore_index and the
    # channel reduction were already handled in-kernel).
    total = jnp.sum(out)
    if reduction == "mean":
        return total / float(N * HW)
    return total


def focal_loss_ref(predict, target, *, alpha=0.25, gamma=2.0, eps=1e-8,
                   ignore_index=None, reduction="mean"):
    """Pure-JAX reference mirroring the PyTorch forward."""
    p = jax.nn.softmax(predict, axis=1) + eps
    t = target
    if ignore_index == 0:
        p = p[:, 1:]
        t = t[:, 1:]
    term_true = -alpha * (1.0 - p) ** gamma * jnp.log(p)
    term_false = -(1.0 - alpha) * p ** gamma * jnp.log(1.0 - p)
    loss = jnp.sum(term_true * t + term_false * (1.0 - t), axis=1)
    if reduction == "mean":
        return loss.mean()
    if reduction == "sum":
        return loss.sum()
    return loss


if __name__ == "__main__":
    key = jax.random.PRNGKey(0)
    k_pred, k_lbl = jax.random.split(key)

    N, C, H, W = 2, 4, 16, 16
    predict = jax.random.normal(k_pred, (N, C, H, W), dtype=jnp.float32)

    # one-hot target with the same NCHW shape as predict
    labels = jax.random.randint(k_lbl, (N, H, W), 0, C)
    target = jnp.transpose(
        jax.nn.one_hot(labels, C, dtype=jnp.float32), (0, 3, 1, 2))

    # 1) default config: mean reduction, one-hot target, no ignore_index
    loss = jax.block_until_ready(
        focal_loss(predict, target, alpha=0.25, gamma=2.0, eps=1e-8,
                   ignore_index=None, reduction="mean"))
    ref = focal_loss_ref(predict, target, alpha=0.25, gamma=2.0, eps=1e-8,
                         ignore_index=None, reduction="mean")
    assert jnp.allclose(loss, ref, rtol=2e-5, atol=1e-6), (loss, ref)

    # 2) ignore_index == 0 + sum reduction
    loss2 = jax.block_until_ready(
        focal_loss(predict, target, alpha=0.25, gamma=2.0, eps=1e-8,
                   ignore_index=0, reduction="sum"))
    ref2 = focal_loss_ref(predict, target, alpha=0.25, gamma=2.0, eps=1e-8,
                          ignore_index=0, reduction="sum")
    assert jnp.allclose(loss2, ref2, rtol=2e-5, atol=1e-5), (loss2, ref2)

    # 3) integer-label fast path (no one-hot HBM stream) -- identical semantics
    loss3 = jax.block_until_ready(
        focal_loss(predict, labels=labels, alpha=0.25, gamma=2.0, eps=1e-8,
                   ignore_index=None, reduction="mean"))
    assert jnp.allclose(loss3, ref, rtol=2e-5, atol=1e-6), (loss3, ref)

    print("KERNEL_OK")
</pallas_src>

<mosaic_0001>
module attributes {stable_mosaic.version = 11 : i64} {
  func.func @_focal_kernel(%arg0: i32, %arg1: i32, %arg2: i32, %arg3: memref<1x4x256xf32, #tpu.memory_space<vmem>>, %arg4: memref<1x4x256xf32, #tpu.memory_space<vmem>>, %arg5: memref<1x1x1x256xf32, #tpu.memory_space<vmem>>) attributes {dimension_semantics = [#tpu.dimension_semantics<parallel>, #tpu.dimension_semantics<parallel>, #tpu.dimension_semantics<arbitrary>], iteration_bounds = array<i64: 2, 1, 1>, scalar_prefetch = 0 : i64, scratch_operands = 0 : i64, tpu.core_type = #tpu.core_type<tc>, window_params = [{transform_indices = @transform_0, window_bounds = array<i64: 1, 4, 256>}, {transform_indices = @transform_1, window_bounds = array<i64: 1, 4, 256>}, {transform_indices = @transform_2, window_bounds = array<i64: 1, 1, 1, 256>}]} {
    %c0_i32 = arith.constant 0 : i32
    %0 = arith.cmpi eq, %arg2, %c0_i32 : i32
    %1 = arith.extui %0 : i1 to i32
    %c0_i32_0 = arith.constant 0 : i32
    %2 = arith.cmpi ne, %1, %c0_i32_0 : i32
    scf.if %2 {
      %cst_22 = arith.constant 0.000000e+00 : f32
      %47 = vector.broadcast %cst_22 : f32 to vector<1x256xf32>
      %c0_23 = arith.constant 0 : index
      %c0_24 = arith.constant 0 : index
      %c0_25 = arith.constant 0 : index
      %c0_26 = arith.constant 0 : index
      %48 = vector.load %arg5[%c0_23, %c0_24, %c0_25, %c0_26] : memref<1x1x1x256xf32, #tpu.memory_space<vmem>>, vector<1x1x1x256xf32>
      %49 = vector.shape_cast %48 : vector<1x1x1x256xf32> to vector<1x256xf32>
      %50 = vector.shape_cast %47 : vector<1x256xf32> to vector<1x1x1x256xf32>
      tpu.vector_store %arg5[%c0_23, %c0_24, %c0_25, %c0_26], %50 {strides = array<i32>} : memref<1x1x1x256xf32, #tpu.memory_space<vmem>>, vector<1x1x1x256xf32>,
    } else {
    }
    %c0 = arith.constant 0 : index
    %c0_1 = arith.constant 0 : index
    %c0_2 = arith.constant 0 : index
    %3 = vector.load %arg3[%c0, %c0_1, %c0_2] : memref<1x4x256xf32, #tpu.memory_space<vmem>>, vector<1x4x256xf32>
    %4 = vector.shape_cast %3 : vector<1x4x256xf32> to vector<4x256xf32>
    %cst = arith.constant dense<0xFF800000> : vector<256xf32>
    %5 = vector.multi_reduction <maximumf>, %4, %cst [0] : vector<4x256xf32> to vector<256xf32>
    %6 = vector.shape_cast %5 : vector<256xf32> to vector<1x256xf32>
    %7 = vector.broadcast %6 : vector<1x256xf32> to vector<4x256xf32>
    %8 = arith.subf %4, %7 : vector<4x256xf32>
    %9 = math.exp %8 : vector<4x256xf32>
    %cst_3 = arith.constant dense<0.000000e+00> : vector<256xf32>
    %10 = vector.multi_reduction <add>, %9, %cst_3 [0] : vector<4x256xf32> to vector<256xf32>
    %11 = vector.shape_cast %10 : vector<256xf32> to vector<1x256xf32>
    %cst_4 = arith.constant 1.000000e+00 : f32
    %12 = vector.broadcast %cst_4 : f32 to vector<1x256xf32>
    %13 = arith.divf %12, %11 : vector<1x256xf32>
    %14 = math.log %11 : vector<1x256xf32>
    %15 = vector.broadcast %13 : vector<1x256xf32> to vector<4x256xf32>
    %16 = arith.mulf %9, %15 : vector<4x256xf32>
    %cst_5 = arith.constant 9.99999993E-9 : f32
    %17 = vector.broadcast %cst_5 : f32 to vector<4x256xf32>
    %18 = arith.addf %16, %17 : vector<4x256xf32>
    %cst_6 = arith.constant 1.000000e+00 : f32
    %19 = vector.broadcast %cst_6 : f32 to vector<4x256xf32>
    %20 = arith.subf %19, %18 : vector<4x256xf32>
    %21 = vector.broadcast %14 : vector<1x256xf32> to vector<4x256xf32>
    %22 = arith.subf %8, %21 : vector<4x256xf32>
    %cst_7 = arith.constant -18.420681 : f32
    %23 = vector.broadcast %cst_7 : f32 to vector<4x256xf32>
    %24 = arith.maximumf %22, %23 : vector<4x256xf32>
    %25 = math.log %20 : vector<4x256xf32>
    %26 = arith.mulf %20, %20 : vector<4x256xf32>
    %27 = arith.mulf %18, %18 : vector<4x256xf32>
    %cst_8 = arith.constant -2.500000e-01 : f32
    %28 = vector.broadcast %cst_8 : f32 to vector<4x256xf32>
    %29 = arith.mulf %28, %26 : vector<4x256xf32>
    %30 = arith.mulf %29, %24 : vector<4x256xf32>
    %cst_9 = arith.constant -7.500000e-01 : f32
    %31 = vector.broadcast %cst_9 : f32 to vector<4x256xf32>
    %32 = arith.mulf %31, %27 : vector<4x256xf32>
    %33 = arith.mulf %32, %25 : vector<4x256xf32>
    %c0_10 = arith.constant 0 : index
    %c0_11 = arith.constant 0 : index
    %c0_12 = arith.constant 0 : index
    %34 = vector.load %arg4[%c0_10, %c0_11, %c0_12] : memref<1x4x256xf32, #tpu.memory_space<vmem>>, vector<1x4x256xf32>
    %35 = vector.shape_cast %34 : vector<1x4x256xf32> to vector<4x256xf32>
    %36 = arith.subf %30, %33 : vector<4x256xf32>
    %37 = arith.mulf %35, %36 : vector<4x256xf32>
    %38 = arith.addf %33, %37 : vector<4x256xf32>
    %cst_13 = arith.constant dense<0.000000e+00> : vector<256xf32>
    %39 = vector.multi_reduction <add>, %38, %cst_13 [0] : vector<4x256xf32> to vector<256xf32>
    %40 = vector.shape_cast %39 : vector<256xf32> to vector<1x256xf32>
    %c0_14 = arith.constant 0 : index
    %c0_15 = arith.constant 0 : index
    %c0_16 = arith.constant 0 : index
    %c0_17 = arith.constant 0 : index
    %41 = vector.load %arg5[%c0_14, %c0_15, %c0_16, %c0_17] : memref<1x1x1x256xf32, #tpu.memory_space<vmem>>, vector<1x1x1x256xf32>
    %42 = vector.shape_cast %41 : vector<1x1x1x256xf32> to vector<1x256xf32>
    %43 = arith.addf %42, %40 : vector<1x256xf32>
    %c0_18 = arith.constant 0 : index
    %c0_19 = arith.constant 0 : index
    %c0_20 = arith.constant 0 : index
    %c0_21 = arith.constant 0 : index
    %44 = vector.load %arg5[%c0_18, %c0_19, %c0_20, %c0_21] : memref<1x1x1x256xf32, #tpu.memory_space<vmem>>, vector<1x1x1x256xf32>
    %45 = vector.shape_cast %44 : vector<1x1x1x256xf32> to vector<1x256xf32>
    %46 = vector.shape_cast %43 : vector<1x256xf32> to vector<1x1x1x256xf32>
    tpu.vector_store %arg5[%c0_18, %c0_19, %c0_20, %c0_21], %46 {strides = array<i32>} : memref<1x1x1x256xf32, #tpu.memory_space<vmem>>, vector<1x1x1x256xf32>,
    return
  }
  func.func @transform_0(%arg0: i32, %arg1: i32, %arg2: i32) -> (i32, i32, i32) {
    %c1_i32 = arith.constant 1 : i32
    %0 = arith.muli %arg1, %c1_i32 : i32
    %1 = arith.addi %0, %arg2 : i32
    %c0_i32 = arith.constant 0 : i32
    %c0_i32_0 = arith.constant 0 : i32
    return %arg0, %c0_i32, %1 : i32, i32, i32
  }
  func.func @transform_1(%arg0: i32, %arg1: i32, %arg2: i32) -> (i32, i32, i32) {
    %c1_i32 = arith.constant 1 : i32
    %0 = arith.muli %arg1, %c1_i32 : i32
    %1 = arith.addi %0, %arg2 : i32
    %c0_i32 = arith.constant 0 : i32
    %c0_i32_0 = arith.constant 0 : i32
    return %arg0, %c0_i32, %1 : i32, i32, i32
  }
  func.func @transform_2(%arg0: i32, %arg1: i32, %arg2: i32) -> (i32, i32, i32, i32) {
    %c0_i32 = arith.constant 0 : i32
    %c0_i32_0 = arith.constant 0 : i32
    %c0_i32_1 = arith.constant 0 : i32
    return %arg0, %arg1, %c0_i32, %c0_i32_0 : i32, i32, i32, i32
  }
}

</mosaic_0001>

<llo_original>
// kernel: tpu_custom_call.1
$region0: #{tpu_custom_call.1}
  #allocation0 [shape = 'u32[]', space=smem, size = 0x4, offset = 0x4, fixed_abs, tag = 'smem constant byte address 0x4 - core index']
  #allocation1 [shape = 'u32[144,128]{1,0:T(1,128)}', space=vmem, size = 0x12000, scoped, tag = 'internal scratch']
  %s0 = inlined_call_operand.hbm [shape: f32[2,4,256], index: 0, kind: input, shape index: {}]
  %s1 = inlined_call_operand.hbm [shape: f32[2,4,256], index: 1, kind: input, shape index: {}]
  %s2 = inlined_call_operand.hbm [shape: f32[2,1,1,256], index: 2, kind: output, shape index: {}]
  %s3 = sld [smem:[#allocation0]]
  $region53: #{tpu_custom_call.1} parent=0
    _
  %s5 = ssub.s32 1, %s3
  %s6 = scalar_select 0, %s5, %s3
  $region1: #{tpu_custom_call.1} parent=0
    #allocation2 [shape = 'u8[8192]{0}', space=vmem, size = 0x2000, scoped, tag = 'input window, operand 0']
    #allocation3 [shape = 's32[2]{0}', space=sflag, size = 0x8, scoped, tag = 'scoped memory for tpu_custom_call.1']
    #allocation4 [shape = 's32[2]{0}', space=sflag, size = 0x8, scoped, tag = 'scoped memory for tpu_custom_call.1']
    #allocation5 [shape = 'u8[8192]{0}', space=vmem, size = 0x2000, scoped, tag = 'input window, operand 1']
    #allocation6 [shape = 's32[2]{0}', space=sflag, size = 0x8, scoped, tag = 'scoped memory for tpu_custom_call.1']
    #allocation7 [shape = 'u8[2048]{0}', space=vmem, size = 0x800, scoped, tag = 'output window, operand 0']
    %7 = vsyncpa [#allocation3], 0
    %s8 = scalar_lea.sflag [#allocation3], 1
    %9 = vsyncpa %s8, 0
    %10 = vsyncpa [#allocation6], 0
    %s11 = scalar_lea.sflag [#allocation6], 1
    %12 = vsyncpa %s11, 0
    %13 = vsyncpa [#allocation4], 0
    %s14 = scalar_lea.sflag [#allocation4], 1
    %15 = vsyncpa %s14, 0
    loop: start=0, step=1, limit=4
    $region2: #{tpu_custom_call.1} parent=1 // loop_pre_header
      _
    $region3: #{tpu_custom_call.1} parent=1 // loop_header
      %s17 = sphi 0, %s21
      %p18 = scmp.ge.s32.totalorder %s17, 4
      %s24 = sphi 0, %s43
      %s25 = sphi 0, %s39
      %s26 = sphi 0, %s35
      %s27 = sphi 0, %s24
      %s28 = sphi 0, %s25
      %s29 = sphi 0, %s26
      %s30 = sphi 0, %s27
      %s31 = sphi 0, %s28
      %s32 = sphi 0, %s29
      %s50 = sphi 0, %s52
      %s53 = sphi 0, %s50
      %s54 = sphi 0, %s53
      %s70 = sphi 0, %s54
      %s80 = sphi 0, %s82
      %s83 = sphi 0, %s80
      %s84 = sphi 0, %s83
      %s100 = sphi 0, %s84
      %s108 = sphi 0, %s110
      %s111 = sphi 0, %s108
      %s112 = sphi 0, %s111
      %s128 = sphi 0, %s112
    $region4: #{tpu_custom_call.1} parent=1 // loop_header_branch
      %20 = sbr.rel (%p18) target = $region8
    $region5: #{tpu_custom_call.1} parent=1 // loop_body
      %s22 = ssub.s32 %s17, 1
      %s23 = ssub.s32 %s17, 2
      %s33 = sadd.s32 1, %s26
      %p34 = scmp.ge.s32.totalorder %s33, 1
      %s35 = scalar_select %p34, 0, %s33
      %s36 = sadd.s32 1, %s25
      %s37 = scalar_select %p34, %s36, %s25
      %p38 = scmp.ge.s32.totalorder %s37, 1
      %s39 = scalar_select %p38, 0, %s37
      %s40 = sadd.s32 1, %s24
      %s41 = scalar_select %p38, %s40, %s24
      %p42 = scmp.ge.s32.totalorder %s41, 2
      %s43 = scalar_select %p42, 0, %s41
      %s44 = sadd.s32 %s25, %s26
      %s45 = sadd.s32 %s39, %s35
      %s46 = ssub.s32 %s24, %s43
      %s47 = ssub.s32 %s44, %s45
      %s48 = sor.u32 %s46, %s47
      %p49 = scmp.eq.s32.totalorder %s48, 0
      %s51 = sadd.s32 %s50, 1
      %s52 = scalar_select %p49, %s50, %s51
      %p55 = pneg %p49
      %p56 = scmp.eq.s32.totalorder %s17, 1
      %p57 = por %p55, %p56
      %p58 = scmp.ne.s32.totalorder %s50, %s53
      %p59 = scmp.eq.s32.totalorder %s17, 0
      %p60 = por %p58, %p59
      %p61 = scmp.ne.s32.totalorder %s50, %s53
      %p62 = scmp.eq.s32.totalorder %s22, 1
      %p63 = por %p61, %p62
      %p64 = scmp.ne.s32.totalorder %s53, %s54
      %p65 = scmp.eq.s32.totalorder %s22, 0
      %p66 = por %p64, %p65
      %p67 = scmp.ne.s32.totalorder %s53, %s54
      %p68 = scmp.eq.s32.totalorder %s23, 1
      %p69 = por %p67, %p68
      %p71 = scmp.ne.s32.totalorder %s54, %s70
      %p72 = scmp.eq.s32.totalorder %s23, 0
      %p73 = por %p71, %p72
      %s74 = sadd.s32 %s25, %s26
      %s75 = sadd.s32 %s39, %s35
      %s76 = ssub.s32 %s24, %s43
      %s77 = ssub.s32 %s74, %s75
      %s78 = sor.u32 %s76, %s77
      %p79 = scmp.eq.s32.totalorder %s78, 0
      %s81 = sadd.s32 %s80, 1
      %s82 = scalar_select %p79, %s80, %s81
      %p85 = pneg %p79
      %p86 = scmp.eq.s32.totalorder %s17, 1
      %p87 = por %p85, %p86
      %p88 = scmp.ne.s32.totalorder %s80, %s83
      %p89 = scmp.eq.s32.totalorder %s17, 0
      %p90 = por %p88, %p89
      %p91 = scmp.ne.s32.totalorder %s80, %s83
      %p92 = scmp.eq.s32.totalorder %s22, 1
      %p93 = por %p91, %p92
      %p94 = scmp.ne.s32.totalorder %s83, %s84
      %p95 = scmp.eq.s32.totalorder %s22, 0
      %p96 = por %p94, %p95
      %p97 = scmp.ne.s32.totalorder %s83, %s84
      %p98 = scmp.eq.s32.totalorder %s23, 1
      %p99 = por %p97, %p98
      %p101 = scmp.ne.s32.totalorder %s84, %s100
      %p102 = scmp.eq.s32.totalorder %s23, 0
      %p103 = por %p101, %p102
      %s104 = ssub.s32 %s24, %s43
      %s105 = ssub.s32 %s25, %s39
      %s106 = sor.u32 %s104, %s105
      %p107 = scmp.eq.s32.totalorder %s106, 0
      %s109 = sadd.s32 %s108, 1
      %s110 = scalar_select %p107, %s108, %s109
      %p113 = pneg %p107
      %p114 = scmp.eq.s32.totalorder %s17, 1
      %p115 = por %p113, %p114
      %p116 = scmp.ne.s32.totalorder %s108, %s111
      %p117 = scmp.eq.s32.totalorder %s17, 0
      %p118 = por %p116, %p117
      %p119 = scmp.ne.s32.totalorder %s108, %s111
      %p120 = scmp.eq.s32.totalorder %s22, 1
      %p121 = por %p119, %p120
      %p122 = scmp.ne.s32.totalorder %s111, %s112
      %p123 = scmp.eq.s32.totalorder %s22, 0
      %p124 = por %p122, %p123
      %p125 = scmp.ne.s32.totalorder %s111, %s112
      %p126 = scmp.eq.s32.totalorder %s23, 1
      %p127 = por %p125, %p126
      %p129 = scmp.ne.s32.totalorder %s112, %s128
      %p130 = scmp.eq.s32.totalorder %s23, 0
      %p131 = por %p129, %p130
      %p132 = scmp.le.s32.totalorder 1, %s17
      %p133 = scmp.lt.s32.totalorder %s17, 3
      %p134 = pnand %p132, %p133
      %p135 = pneg %p134
      // Predicated region
      $region9: #{tpu_custom_call.1} parent=5 // pred_check
        _
      $region10: #{tpu_custom_call.1} parent=5 // pred_check_branch
        %137 = sbr.rel (%p134) target = $region12
      $region11: #{tpu_custom_call.1} parent=5 // pred_region
        %s138 = ssub.s32 %s17, 1
      $region12: #{tpu_custom_call.1} parent=5 // pred_fallthru
        _
      %p139 = scmp.lt.s32.totalorder %s17, 2
      // Predicated region
      $region13: #{tpu_custom_call.1} parent=5 // pred_check
        %p140 = pneg %p139
      $region14: #{tpu_custom_call.1} parent=5 // pred_check_branch
        %142 = sbr.rel (%p140) target = $region16
      $region15: #{tpu_custom_call.1} parent=5 // pred_region
        // Predicated region
        $region17: #{tpu_custom_call.1} parent=15 // pred_check
          %p143 = pneg %p60
        $region18: #{tpu_custom_call.1} parent=15 // pred_check_branch
          %145 = sbr.rel (%p143) target = $region20
        $region19: #{tpu_custom_call.1} parent=15 // pred_region
          %s146 = sand.u32 %s50, 1
          %s147 = scalar_lea.sflag [#allocation3], %s146
          %s148 = sand.u32 %s50, 1
          %s149 = smul.addr %s148, 8
          %s150 = scalar_lea.vmem [#allocation2], %s149
          %s151 = sadd.s32 %s25, %s26
          %s152 = smul.u32 2, %s151
          %s154 = ssub.s32 128, 128
          %155 = vsyncadd %s147, %s154
          %s156 = smul.addr %s24, 2
          %s157 = sadd.s32 %s152, %s156
          %s158 = smul.addr %s157, 64
          %s159 = scalar_lea.hbm %s0, %s158
          %s161 = sshll.u32 %s150, 4
          %s162 = int_to_ptr.vmem [resolvable:$true] %s161
          %164 = dma.hbm_to_vmem [thread:$0]  %s159, 128, %s162, %s147
        $region20: #{tpu_custom_call.1} parent=15 // pred_fallthru
          _
        // Predicated region
        $region21: #{tpu_custom_call.1} parent=15 // pred_check
          %p165 = pneg %p90
        $region22: #{tpu_custom_call.1} parent=15 // pred_check_branch
          %167 = sbr.rel (%p165) target = $region24
        $region23: #{tpu_custom_call.1} parent=15 // pred_region
          %s168 = sand.u32 %s80, 1
          %s169 = scalar_lea.sflag [#allocation6], %s168
          %s170 = sand.u32 %s80, 1
          %s171 = smul.addr %s170, 8
          %s172 = scalar_lea.vmem [#allocation5], %s171
          %s173 = sadd.s32 %s25, %s26
          %s174 = smul.u32 2, %s173
          %s176 = ssub.s32 128, 128
          %177 = vsyncadd %s169, %s176
          %s178 = smul.addr %s24, 2
          %s179 = sadd.s32 %s174, %s178
          %s180 = smul.addr %s179, 64
          %s181 = scalar_lea.hbm %s1, %s180
          %s183 = sshll.u32 %s172, 4
          %s184 = int_to_ptr.vmem [resolvable:$true] %s183
          %186 = dma.hbm_to_vmem [thread:$0]  %s181, 128, %s184, %s169
        $region24: #{tpu_custom_call.1} parent=15 // pred_fallthru
          _
      $region16: #{tpu_custom_call.1} parent=5 // pred_fallthru
        _
      %p187 = scmp.le.s32.totalorder 1, %s17
      %p188 = scmp.lt.s32.totalorder %s17, 3
      %p189 = pnand %p187, %p188
      %p190 = pneg %p189
      // Predicated region
      $region25: #{tpu_custom_call.1} parent=5 // pred_check
        _
      $region26: #{tpu_custom_call.1} parent=5 // pred_check_branch
        %192 = sbr.rel (%p189) target = $region28
      $region27: #{tpu_custom_call.1} parent=5 // pred_region
        %s193 = ssub.s32 %s17, 1
        %s194 = sand.u32 %s53, 1
        %s195 = scalar_lea.sflag [#allocation3], %s194
        %s196 = sand.u32 %s53, 1
        %s197 = smul.addr %s196, 8
        %s198 = scalar_lea.vmem [#allocation2], %s197
        // Predicated region
        $region29: #{tpu_custom_call.1} parent=27 // pred_check
          %p199 = pneg %p66
        $region30: #{tpu_custom_call.1} parent=27 // pred_check_branch
          %201 = sbr.rel (%p199) target = $region32
        $region31: #{tpu_custom_call.1} parent=27 // pred_region
          %202 = dma.done %s195, 128
        $region32: #{tpu_custom_call.1} parent=27 // pred_fallthru
          _
        %s203 = sand.u32 %s83, 1
        %s204 = scalar_lea.sflag [#allocation6], %s203
        %s205 = sand.u32 %s83, 1
        %s206 = smul.addr %s205, 8
        %s207 = scalar_lea.vmem [#allocation5], %s206
        // Predicated region
        $region33: #{tpu_custom_call.1} parent=27 // pred_check
          %p208 = pneg %p96
        $region34: #{tpu_custom_call.1} parent=27 // pred_check_branch
          %210 = sbr.rel (%p208) target = $region36
        $region35: #{tpu_custom_call.1} parent=27 // pred_region
          %211 = dma.done %s204, 128
        $region36: #{tpu_custom_call.1} parent=27 // pred_fallthru
          _
        %s212 = sand.u32 %s53, 1
        %s213 = scalar_lea.sflag [#allocation3], %s212
        %s214 = sand.u32 %s53, 1
        %s215 = smul.addr %s214, 8
        %s216 = scalar_lea.vmem [#allocation2], %s215
        %p217 = pneg %p66
        %p218 = pneg %p63
        %s219 = sand.u32 %s83, 1
        %s220 = scalar_lea.sflag [#allocation6], %s219
        %s221 = sand.u32 %s83, 1
        %s222 = smul.addr %s221, 8
        %s223 = scalar_lea.vmem [#allocation5], %s222
        %p224 = pneg %p96
        %p225 = pneg %p93
        %p226 = pneg %p124
        %p227 = pneg %p121
        %s228 = sand.u32 %s111, 1
        %s229 = scalar_lea.sflag [#allocation4], %s228
        %s230 = sand.u32 %s111, 1
        %s231 = smul.addr %s230, 2
        %s232 = scalar_lea.vmem [#allocation7], %s231
        %s233 = sadd.s32 %s28, %s29
        %s234 = smul.u32 2, %s233
        %s235 = sadd.s32 %s28, %s29
        %s236 = smul.u32 2, %s235
        %p237 = scmp.eq.s32.totalorder %s29, 0
        // Predicated region
        $region37: #{tpu_custom_call.1} parent=27 // pred_check
          %p238 = pneg %p237
        $region38: #{tpu_custom_call.1} parent=27 // pred_check_branch
          %240 = sbr.rel (%p238) target = $region40
        $region39: #{tpu_custom_call.1} parent=27 // pred_region
          %v241 = vlaneseq
          %vm242 = vcmp.ge.s32.totalorder %v241, 0
          %vm243 = vcmp.lt.s32.totalorder %v241, 256
          %vm244 = vmand %vm242, %vm243
          %245 = vst.msk [vmem:[%s232] sm:$0x3] %vm244, 0.0
        $region40: #{tpu_custom_call.1} parent=27 // pred_fallthru
          _
        %v246 = vld [vmem:[%s198] sm:$0xff]
        %v248 = vcombine.high %v246, %v246
        %vm250 = vcmask 1043456
        %v251 = vsel %vm250, %v246, -inf
        %v252 = vrot.slane %v251, 4
        %v253 = vmax.f32 %v251, %v252
        %v254 = vrot.slane %v253, 2
        %v255 = vmax.f32 %v253, %v254
        %v256 = vrot.slane %v255, 1
        %v257 = vmax.f32 %v255, %v256
        %v258 = vsel %vm250, %v248, -inf
        %v259 = vrot.slane %v258, 4
        %v260 = vmax.f32 %v258, %v259
        %v261 = vrot.slane %v260, 2
        %v262 = vmax.f32 %v260, %v261
        %v263 = vrot.slane %v262, 1
        %v264 = vmax.f32 %v262, %v263
        %v267 = vcombine.low %v257, %v264
        %v269 = vsub.f32 %v246, %v267
        %v270 = vmul.f32 %v269, 1.442695
        %v271 = vpow.pop %v270
        %v273 = vcombine.high %v271, %v271
        %v275 = vsel %vm250, %v271, 0.0
        %v276 = vrot.slane %v275, 4
        %v277 = vadd.f32 %v275, %v276
        %v278 = vrot.slane %v277, 2
        %v279 = vadd.f32 %v277, %v278
        %v280 = vrot.slane %v279, 1
        %v281 = vadd.f32 %v279, %v280
        %v282 = vsel %vm250, %v273, 0.0
        %v283 = vrot.slane %v282, 4
        %v284 = vadd.f32 %v282, %v283
        %v285 = vrot.slane %v284, 2
        %v286 = vadd.f32 %v284, %v285
        %v287 = vrot.slane %v286, 1
        %v288 = vadd.f32 %v286, %v287
        %v289 = vrcp.pop %v281
        %v290 = vmul.f32 1.0, %v289
        %v291 = vrcp.pop %v288
        %v292 = vmul.f32 1.0, %v291
        %v293 = vlog2.pop %v281
        %v294 = vmul.f32 %v293, 0.6931472
        %v295 = vlog2.pop %v288
        %v296 = vmul.f32 %v295, 0.6931472
        %v299 = vcombine.low %v290, %v292
        %v301 = vmul.f32 %v271, %v299
        %v302 = vadd.f32 %v301, 1e-08
        %v303 = vsub.f32 1.0, %v302
        %v306 = vcombine.low %v294, %v296
        %v308 = vsub.f32 %v269, %v306
        %v309 = vmax.f32 %v308, -18.420681
        %v310 = vlog2.pop %v303
        %v311 = vmul.f32 %v310, 0.6931472
        %v312 = vmul.f32 %v303, %v303
        %v313 = vmul.f32 %v302, %v302
        %v314 = vmul.f32 %v312, -0.25
        %v315 = vmul.f32 %v314, %v309
        %v316 = vmul.f32 %v313, -0.75
        %v317 = vmul.f32 %v316, %v311
        %v318 = vld [vmem:[%s207] sm:$0xff]
        %v319 = vsub.f32 %v315, %v317
        %v320 = vmul.f32 %v318, %v319
        %v321 = vadd.f32 %v317, %v320
        %v323 = vcombine.high %v321, %v321
        %v325 = vsel %vm250, %v321, 0.0
        %v326 = vrot.slane %v325, 4
        %v327 = vadd.f32 %v325, %v326
        %v328 = vrot.slane %v327, 2
        %v329 = vadd.f32 %v327, %v328
        %v330 = vrot.slane %v329, 1
        %v331 = vadd.f32 %v329, %v330
        %v332 = vsel %vm250, %v323, 0.0
        %v333 = vrot.slane %v332, 4
        %v334 = vadd.f32 %v332, %v333
        %v335 = vrot.slane %v334, 2
        %v336 = vadd.f32 %v334, %v335
        %v337 = vrot.slane %v336, 1
        %v338 = vadd.f32 %v336, %v337
        %v339 = vld [vmem:[%s232] sm:$0x3]
        %v342 = vcombine.low %v331, %v338
        %v344 = vunpack.c.l.s4 1966171168
        %v345 = vunpack.c.0.s8 %v344
        %v346 = vlaneseq
        %v347 = vshrl.u32 %v346, 7
        %v348 = vsub.s32 %v345, %v347
        %v349 = vrot.slane %v342, %v348
        %v351 = vunpack.c.l.s4 1966171168
        %v352 = vunpack.c.0.s8 %v351
        %v353 = vlaneseq
        %v354 = vshrl.u32 %v353, 7
        %v355 = vsub.s32 %v352, %v354
        %v356 = vrot.slane %v349, %v355
        %v358 = vadd.f32 %v339, %v356
        %v359 = vlaneseq
        %vm360 = vcmp.ge.s32.totalorder %v359, 0
        %vm361 = vcmp.lt.s32.totalorder %v359, 256
        %vm362 = vmand %vm360, %vm361
        %363 = vst.msk [vmem:[%s232] sm:$0x3] %vm362, %v358
        %s364 = sand.u32 %s111, 1
        %s365 = scalar_lea.sflag [#allocation4], %s364
        %s366 = sand.u32 %s111, 1
        %s367 = smul.addr %s366, 2
        %s368 = scalar_lea.vmem [#allocation7], %s367
        // Predicated region
        $region41: #{tpu_custom_call.1} parent=27 // pred_check
          %p369 = pneg %p121
        $region42: #{tpu_custom_call.1} parent=27 // pred_check_branch
          %371 = sbr.rel (%p369) target = $region44
        $region43: #{tpu_custom_call.1} parent=27 // pred_region
          %s373 = ssub.s32 32, 32
          %374 = vsyncadd %s365, %s373
          %s375 = smul.addr %s28, 2
          %s376 = smul.addr %s27, 2
          %s377 = sadd.s32 %s375, %s376
          %s378 = smul.addr %s377, 16
          %s379 = scalar_lea.hbm %s2, %s378
          %s381 = sshll.u32 %s368, 4
          %s382 = int_to_ptr.vmem [resolvable:$true] %s381
          %384 = dma.vmem_to_hbm [thread:$0]  %s382, 32, %s379, %s365
        $region44: #{tpu_custom_call.1} parent=27 // pred_fallthru
          _
      $region28: #{tpu_custom_call.1} parent=5 // pred_fallthru
        _
      %p385 = scmp.le.s32.totalorder 2, %s17
      // Predicated region
      $region45: #{tpu_custom_call.1} parent=5 // pred_check
        %p386 = pneg %p385
      $region46: #{tpu_custom_call.1} parent=5 // pred_check_branch
        %388 = sbr.rel (%p386) target = $region48
      $region47: #{tpu_custom_call.1} parent=5 // pred_region
        %s389 = ssub.s32 %s17, 2
        // Predicated region
        $region49: #{tpu_custom_call.1} parent=47 // pred_check
          %p390 = pneg %p127
        $region50: #{tpu_custom_call.1} parent=47 // pred_check_branch
          %392 = sbr.rel (%p390) target = $region52
        $region51: #{tpu_custom_call.1} parent=47 // pred_region
          %s393 = sand.u32 %s112, 1
          %s394 = scalar_lea.sflag [#allocation4], %s393
          %s395 = sand.u32 %s112, 1
          %s396 = smul.addr %s395, 2
          %s397 = scalar_lea.vmem [#allocation7], %s396
          %398 = dma.done %s394, 32
        $region52: #{tpu_custom_call.1} parent=47 // pred_fallthru
          _
      $region48: #{tpu_custom_call.1} parent=5 // pred_fallthru
        _
    $region6: #{tpu_custom_call.1} parent=1 // loop_footer
      %s21 = sadd.s32 1, %s17
    $region7: #{tpu_custom_call.1} parent=1 // loop_footer_branch
      %16 = sbr.rel target = $region3
    $region8: #{tpu_custom_call.1} parent=1 // loop_exit
      _
    %399 = vsyncpa [#allocation3], 1
    %s400 = scalar_lea.sflag [#allocation3], 1
    %401 = vsyncpa %s400, 1
    %402 = vsyncpa [#allocation6], 1
    %s403 = scalar_lea.sflag [#allocation6], 1
    %404 = vsyncpa %s403, 1
    %405 = vsyncpa [#allocation4], 1
    %s406 = scalar_lea.sflag [#allocation4], 1
    %407 = vsyncpa %s406, 1

</llo_original>
